<compile_context>
chip_gen: v6e
topology: v6e:2x2x1
jax: 0.10.0
libtpu: 0.0.40
codegen_flags: <defaults>
</compile_context>

<pallas_src>
import functools

import jax
import jax.numpy as jnp
from jax import lax
from jax.experimental import pallas as pl
from jax.experimental.pallas import tpu as pltpu

_EPS = 1e-8  # matches torch.nn.CosineSimilarity default eps


def _round_up(a, b):
    return ((a + b - 1) // b) * b


def _similarity_kernel(temp_ref, x_ref, y_ref, o_ref, *, matmul_dtype):
    # temp_ref: SMEM (1,) f32;  x_ref: (tm, D);  y_ref: (tn, D);  o_ref: (tm, tn)
    x = x_ref[...]
    y = y_ref[...]

    if matmul_dtype is not None and x.dtype != matmul_dtype:
        xm = x.astype(matmul_dtype)
        ym = y.astype(matmul_dtype)
    else:
        xm, ym = x, y

    # MXU NT matmul: contract the feature axis of both tiles, f32 accumulation.
    dots = lax.dot_general(
        xm, ym,
        dimension_numbers=(((1,), (1,)), ((), ())),
        preferred_element_type=jnp.float32,
    )  # (tm, tn)

    # Row norms computed in-kernel (hidden under MXU slack; removes the
    # hoisted-norm HBM pass and two extra input streams).  Norms stay f32.
    xf = x.astype(jnp.float32)
    yf = y.astype(jnp.float32)
    xn = jnp.sqrt(jnp.sum(xf * xf, axis=-1, keepdims=True))          # (tm, 1)
    ones = jnp.ones((1, xf.shape[-1]), dtype=jnp.float32)
    yn2 = lax.dot_general(                                           # (1, tn), lane-dense
        ones, yf * yf,
        dimension_numbers=(((1,), (1,)), ((), ())),
        preferred_element_type=jnp.float32,
    )
    yn = jnp.sqrt(yn2)

    # Fold temp into the rank-1 y-norm:
    #   dot / max(|x||y|, eps) / temp  ==  dot / max(|x||y|*temp, eps*temp)
    # -> one broadcast mul + max + exact divide in the epilogue.
    temp = temp_ref[0]
    denom = jnp.maximum(xn * (yn * temp), jnp.float32(_EPS) * temp)  # (tm, tn)
    o_ref[...] = (dots / denom).astype(o_ref.dtype)


def _pick_tiles(M, N, D, in_bytes, budget_bytes=20 * 1024 * 1024):
    # Large row tile so the streamed y operand is re-read (M/tm)x fewer times.
    tm = M if M <= 8 else min(512, max(8, (M // 8) * 8))
    if N <= 128:
        tn = N
    elif N < 256:
        tn = 128
    else:
        tn = 256

    def est(tm_, tn_):
        inputs = 2 * (tm_ + tn_) * D * in_bytes     # double-buffered x/y tiles
        squares = (tm_ + tn_) * D * 4               # in-kernel f32 square temps
        out = 2 * tm_ * tn_ * 4                     # double-buffered out tile
        work = 2 * tm_ * tn_ * 4                    # dots + denom temporaries
        return inputs + squares + out + work

    # Shrink tiles for very large D so we stay well inside the scoped VMEM
    # limit on every chip (v7x has only 64 MiB physical VMEM).
    while est(tm, tn) > budget_bytes:
        if tm > 64:
            tm = max(64, _round_up(tm // 2, 8))
        elif tn > 128:
            tn //= 2
        else:
            break
    return tm, tn


def similarity_matrix(x2d, y2d, temp, *, matmul_dtype=None, out_dtype=jnp.float32):
    """Cosine-similarity matrix / temp for x2d (M, D) vs y2d (N, D) -> (M, N)."""
    M, D = x2d.shape
    N, Dy = y2d.shape
    assert D == Dy, "feature dims must match"

    in_bytes = max(jnp.dtype(x2d.dtype).itemsize, jnp.dtype(y2d.dtype).itemsize)
    tm, tn = _pick_tiles(M, N, D, in_bytes)
    grid = (pl.cdiv(M, tm), pl.cdiv(N, tn))

    temp_arr = jnp.asarray(temp, dtype=jnp.float32).reshape((1,))

    kernel = functools.partial(_similarity_kernel, matmul_dtype=matmul_dtype)

    cost = pl.CostEstimate(
        flops=int(2 * M * N * D + 3 * (M + N) * D),
        transcendentals=int(M + N),
        bytes_accessed=int((M * D + N * D) * in_bytes
                           + M * N * jnp.dtype(out_dtype).itemsize),
    )

    return pl.pallas_call(
        kernel,
        out_shape=jax.ShapeDtypeStruct((M, N), out_dtype),
        grid_spec=pltpu.PrefetchScalarGridSpec(
            num_scalar_prefetch=0,
            grid=grid,
            in_specs=[
                pl.BlockSpec(memory_space=pltpu.MemorySpace.SMEM),  # temp scalar
                pl.BlockSpec((tm, D), lambda i, j: (i, 0)),         # x row tile
                pl.BlockSpec((tn, D), lambda i, j: (j, 0)),         # y col tile
            ],
            out_specs=pl.BlockSpec((tm, tn), lambda i, j: (i, j)),
        ),
        compiler_params=pltpu.CompilerParams(
            dimension_semantics=("parallel", "parallel"),
            vmem_limit_bytes=32 * 1024 * 1024,
        ),
        cost_estimate=cost,
    )(temp_arr, x2d, y2d)


def similarity_forward(x, y, temp, **kw):
    """Mirrors Similarity.forward for the scGPT broadcast pattern
    x: (B, 1, D), y: (1, B, D) -> (B, B)."""
    # TODO(synk): general torch CosineSimilarity broadcasting beyond this
    # contrastive (B,1,D) x (1,B,D) layout is not implemented here.
    x2d = jnp.squeeze(x, axis=1)  # (B, D)
    y2d = jnp.squeeze(y, axis=0)  # (B, D)
    return similarity_matrix(x2d, y2d, temp, **kw)


def _reference(x, y, temp):
    # Pure-JAX reference of torch CosineSimilarity(dim=-1)(x, y) / temp.
    xb, yb = jnp.broadcast_arrays(x, y)
    dot = jnp.sum(xb * yb, axis=-1)
    xn = jnp.sqrt(jnp.sum(xb * xb, axis=-1))
    yn = jnp.sqrt(jnp.sum(yb * yb, axis=-1))
    return dot / jnp.maximum(xn * yn, _EPS) / temp


if __name__ == "__main__":
    key = jax.random.PRNGKey(0)
    kx, ky = jax.random.split(key)

    B, D = 8, 32
    temp = 0.5  # Similarity(temp=0.5)

    # scGPT contrastive usage: x unsqueezed at dim 1, y unsqueezed at dim 0.
    x = jax.random.normal(kx, (B, 1, D), dtype=jnp.float32)
    y = jax.random.normal(ky, (1, B, D), dtype=jnp.float32)

    out = similarity_forward(x, y, temp)
    out = jax.block_until_ready(out)

    ref = _reference(x, y, temp)

    assert out.shape == (B, B), out.shape
    assert jnp.allclose(out, ref, atol=1e-3, rtol=1e-3), (
        float(jnp.max(jnp.abs(out - ref)))
    )

    print("KERNEL_OK")
</pallas_src>

<mosaic_0001>
module attributes {stable_mosaic.version = 11 : i64} {
  func.func @_similarity_kernel(%arg0: i32, %arg1: i32, %arg2: memref<1xf32, #tpu.memory_space<smem>>, %arg3: memref<8x32xf32, #tpu.memory_space<vmem>>, %arg4: memref<8x32xf32, #tpu.memory_space<vmem>>, %arg5: memref<8x8xf32, #tpu.memory_space<vmem>>) attributes {dimension_semantics = [#tpu.dimension_semantics<parallel>, #tpu.dimension_semantics<parallel>], iteration_bounds = array<i64: 1, 1>, scalar_prefetch = 0 : i64, scratch_operands = 0 : i64, tpu.core_type = #tpu.core_type<tc>, window_params = [{transform_indices = @transform_0, window_bounds = array<i64: 1>}, {transform_indices = @transform_1, window_bounds = array<i64: 8, 32>}, {transform_indices = @transform_2, window_bounds = array<i64: 8, 32>}, {transform_indices = @transform_3, window_bounds = array<i64: 8, 8>}]} {
    %c0 = arith.constant 0 : index
    %c0_0 = arith.constant 0 : index
    %0 = vector.load %arg3[%c0, %c0_0] : memref<8x32xf32, #tpu.memory_space<vmem>>, vector<8x32xf32>
    %c0_1 = arith.constant 0 : index
    %c0_2 = arith.constant 0 : index
    %1 = vector.load %arg4[%c0_1, %c0_2] : memref<8x32xf32, #tpu.memory_space<vmem>>, vector<8x32xf32>
    %cst = arith.constant dense<0.000000e+00> : vector<8x8xf32>
    %2 = tpu.matmul %0, %1, %cst {dimension_numbers = #tpu.dot_dimension_numbers<[1], [1], [0], [0], [0, 0, 1, 0], [], []>} : vector<8x32xf32>, vector<8x32xf32>, vector<8x8xf32> -> vector<8x8xf32>
    %3 = arith.mulf %0, %0 : vector<8x32xf32>
    %cst_3 = arith.constant dense<0.000000e+00> : vector<8xf32>
    %4 = vector.multi_reduction <add>, %3, %cst_3 [1] : vector<8x32xf32> to vector<8xf32>
    %5 = vector.shape_cast %4 : vector<8xf32> to vector<8x1xf32>
    %6 = math.sqrt %5 : vector<8x1xf32>
    %cst_4 = arith.constant 1.000000e+00 : f32
    %7 = vector.broadcast %cst_4 : f32 to vector<1x32xf32>
    %8 = arith.mulf %1, %1 : vector<8x32xf32>
    %cst_5 = arith.constant dense<0.000000e+00> : vector<1x8xf32>
    %9 = tpu.matmul %7, %8, %cst_5 {dimension_numbers = #tpu.dot_dimension_numbers<[1], [1], [0], [0], [0, 0, 1, 0], [], []>} : vector<1x32xf32>, vector<8x32xf32>, vector<1x8xf32> -> vector<1x8xf32>
    %10 = math.sqrt %9 : vector<1x8xf32>
    %c0_6 = arith.constant 0 : index
    %11 = memref.load %arg2[%c0_6] : memref<1xf32, #tpu.memory_space<smem>>
    %12 = vector.broadcast %11 : f32 to vector<1x8xf32>
    %13 = arith.mulf %10, %12 : vector<1x8xf32>
    %14 = vector.broadcast %6 : vector<8x1xf32> to vector<8x8xf32>
    %15 = vector.broadcast %13 : vector<1x8xf32> to vector<8x8xf32>
    %16 = arith.mulf %14, %15 : vector<8x8xf32>
    %cst_7 = arith.constant 9.99999993E-9 : f32
    %17 = arith.mulf %cst_7, %11 : f32
    %18 = vector.broadcast %17 : f32 to vector<8x8xf32>
    %19 = arith.maximumf %16, %18 : vector<8x8xf32>
    %20 = arith.divf %2, %19 : vector<8x8xf32>
    %c0_8 = arith.constant 0 : index
    %c0_9 = arith.constant 0 : index
    %21 = vector.load %arg5[%c0_8, %c0_9] : memref<8x8xf32, #tpu.memory_space<vmem>>, vector<8x8xf32>
    tpu.vector_store %arg5[%c0_8, %c0_9], %20 {strides = array<i32>} : memref<8x8xf32, #tpu.memory_space<vmem>>, vector<8x8xf32>,
    return
  }
  func.func @transform_0(%arg0: i32, %arg1: i32) -> i32 {
    %c0_i32 = arith.constant 0 : i32
    %c0_i32_0 = arith.constant 0 : i32
    return %c0_i32 : i32
  }
  func.func @transform_1(%arg0: i32, %arg1: i32) -> (i32, i32) {
    %c0_i32 = arith.constant 0 : i32
    %c0_i32_0 = arith.constant 0 : i32
    return %arg0, %c0_i32 : i32, i32
  }
  func.func @transform_2(%arg0: i32, %arg1: i32) -> (i32, i32) {
    %c0_i32 = arith.constant 0 : i32
    %c0_i32_0 = arith.constant 0 : i32
    return %arg1, %c0_i32 : i32, i32
  }
  func.func @transform_3(%arg0: i32, %arg1: i32) -> (i32, i32) {
    %c0_i32 = arith.constant 0 : i32
    return %arg0, %arg1 : i32, i32
  }
}

</mosaic_0001>

<llo_original>
// kernel: tpu_custom_call.1
$region0: #{tpu_custom_call.1}
  #allocation0 [shape = 'u32[]', space=smem, size = 0x4, offset = 0x4, fixed_abs, tag = 'smem constant byte address 0x4 - core index']
  #allocation1 [shape = 'u32[144,128]{1,0:T(1,128)}', space=vmem, size = 0x12000, scoped, tag = 'internal scratch']
  #allocation2 [shape = 'f32[1]{0:T(128)S(6)}', space=smem, size = 0x200, scoped, tag = 'scoped memory for tpu_custom_call.1']
  %s0 = inlined_call_operand.<no memory space> [shape: f32[1], index: 0, kind: input, shape index: {}]
  %s1 = inlined_call_operand.hbm [shape: f32[8,32], index: 1, kind: input, shape index: {}]
  %s2 = inlined_call_operand.hbm [shape: f32[8,32], index: 2, kind: input, shape index: {}]
  %s3 = inlined_call_operand.hbm [shape: f32[8,8], index: 3, kind: output, shape index: {}]
  %s4 = sld [smem:[#allocation0]]
  $region30: #{tpu_custom_call.1} parent=0
    _
  %s6 = ssub.s32 1, %s4
  %s7 = scalar_select 0, %s6, %s4
  %8 = sst [smem:[#allocation2]] %s0
  $region1: #{tpu_custom_call.1} parent=0
    #allocation3 [shape = 'u8[4096]{0}', space=vmem, size = 0x1000, scoped, tag = 'input window, operand 1, single buffered']
    #allocation4 [shape = 's32[1]{0}', space=sflag, size = 0x4, scoped, tag = 'scoped memory for tpu_custom_call.1']
    #allocation5 [shape = 's32[1]{0}', space=sflag, size = 0x4, scoped, tag = 'scoped memory for tpu_custom_call.1']
    #allocation6 [shape = 'u8[4096]{0}', space=vmem, size = 0x1000, scoped, tag = 'input window, operand 2, single buffered']
    #allocation7 [shape = 's32[1]{0}', space=sflag, size = 0x4, scoped, tag = 'scoped memory for tpu_custom_call.1']
    #allocation8 [shape = 'u8[4096]{0}', space=vmem, size = 0x1000, scoped, tag = 'output window, operand 0, single buffered']
    %9 = vsyncpa [#allocation4], 0
    %10 = vsyncpa [#allocation7], 0
    %11 = vsyncpa [#allocation5], 0
    // Predicated region
    $region2: #{tpu_custom_call.1} parent=1 // pred_check
      _
    $region3: #{tpu_custom_call.1} parent=1 // pred_check_branch
      %13 = sbr.rel (0) target = $region5
    $region4: #{tpu_custom_call.1} parent=1 // pred_region
      _
    $region5: #{tpu_custom_call.1} parent=1 // pred_fallthru
      _
    // Predicated region
    $region6: #{tpu_custom_call.1} parent=1 // pred_check
      _
    $region7: #{tpu_custom_call.1} parent=1 // pred_check_branch
      %15 = sbr.rel (0) target = $region9
    $region8: #{tpu_custom_call.1} parent=1 // pred_region
      %s17 = ssub.s32 128, 128
      %18 = vsyncadd [#allocation4], %s17
      %s20 = sshll.u32 [#allocation3], 4
      %s21 = int_to_ptr.vmem [resolvable:$true] %s20
      %23 = dma.hbm_to_vmem [thread:$0]  %s1, 128, %s21, [#allocation4]
    $region9: #{tpu_custom_call.1} parent=1 // pred_fallthru
      _
    // Predicated region
    $region10: #{tpu_custom_call.1} parent=1 // pred_check
      _
    $region11: #{tpu_custom_call.1} parent=1 // pred_check_branch
      %25 = sbr.rel (0) target = $region13
    $region12: #{tpu_custom_call.1} parent=1 // pred_region
      %s27 = ssub.s32 128, 128
      %28 = vsyncadd [#allocation7], %s27
      %s30 = sshll.u32 [#allocation6], 4
      %s31 = int_to_ptr.vmem [resolvable:$true] %s30
      %33 = dma.hbm_to_vmem [thread:$0]  %s2, 128, %s31, [#allocation7]
    $region13: #{tpu_custom_call.1} parent=1 // pred_fallthru
      _
    // Predicated region
    $region14: #{tpu_custom_call.1} parent=1 // pred_check
      _
    $region15: #{tpu_custom_call.1} parent=1 // pred_check_branch
      %35 = sbr.rel (0) target = $region17
    $region16: #{tpu_custom_call.1} parent=1 // pred_region
      %36 = dma.done [#allocation4], 128
    $region17: #{tpu_custom_call.1} parent=1 // pred_fallthru
      _
    // Predicated region
    $region18: #{tpu_custom_call.1} parent=1 // pred_check
      _
    $region19: #{tpu_custom_call.1} parent=1 // pred_check_branch
      %38 = sbr.rel (0) target = $region21
    $region20: #{tpu_custom_call.1} parent=1 // pred_region
      %39 = dma.done [#allocation7], 128
    $region21: #{tpu_custom_call.1} parent=1 // pred_fallthru
      _
    %v40 = vld [vmem:[#allocation3] sm:$0xff]
    %v41 = vld [vmem:[#allocation6] sm:$0xff]
    %vm42 = vcmask 261120
    %v44 = vsel %vm42, %v40, 0
    %v47 = vsel %vm42, %v41, 0
    %49 = vmatprep.subr.mxu0 0.0
    %50 = vmatpush1.xpose.msra.mxu0 0.0
    %51 = vmatprep.subr.mxu0 0.0
    %52 = vmatpush1.xpose.msra.mxu0 0.0
    %53 = vmatprep.subr.mxu0 0.0
    %54 = vmatpush1.xpose.msra.mxu0 0.0
    %55 = vmatprep.subr.mxu0 0.0
    %56 = vmatpush1.xpose.msra.mxu0 0.0
    %57 = vmatprep.subr.mxu0 0.0
    %58 = vmatpush1.xpose.msra.mxu0 0.0
    %59 = vmatprep.subr.mxu0 0.0
    %60 = vmatpush1.xpose.msra.mxu0 0.0
    %61 = vmatprep.subr.mxu0 0.0
    %62 = vmatpush1.xpose.msra.mxu0 0.0
    %63 = vmatprep.subr.mxu0 0.0
    %64 = vmatpush1.xpose.msra.mxu0 0.0
    %65 = vmatprep.subr.mxu0 0.0
    %66 = vmatpush1.xpose.msra.mxu0 0.0
    %67 = vmatprep.subr.mxu0 0.0
    %68 = vmatpush1.xpose.msra.mxu0 0.0
    %69 = vmatprep.subr.mxu0 0.0
    %70 = vmatpush1.xpose.msra.mxu0 0.0
    %71 = vmatprep.subr.mxu0 0.0
    %72 = vmatpush1.xpose.msra.mxu0 0.0
    %73 = vmatprep.subr.mxu0 0.0
    %74 = vmatpush1.xpose.msra.mxu0 0.0
    %75 = vmatprep.subr.mxu0 0.0
    %76 = vmatpush1.xpose.msra.mxu0 0.0
    %77 = vmatprep.subr.mxu0 0.0
    %78 = vmatpush1.xpose.msra.mxu0 0.0
    %79 = vmatprep.subr.mxu0 0.0
    %80 = vmatpush1.xpose.msra.mxu0 %v47
    %81 = vmatprep.subr.mxu0 0.0
    %82 = vmatpush2.xpose.msra.mxu0 0.0
    %83 = vmatprep.subr.mxu0 0.0
    %84 = vmatpush2.xpose.msra.mxu0 0.0
    %85 = vmatprep.subr.mxu0 0.0
    %86 = vmatpush2.xpose.msra.mxu0 0.0
    %87 = vmatprep.subr.mxu0 0.0
    %88 = vmatpush2.xpose.msra.mxu0 0.0
    %89 = vmatprep.subr.mxu0 0.0
    %90 = vmatpush2.xpose.msra.mxu0 0.0
    %91 = vmatprep.subr.mxu0 0.0
    %92 = vmatpush2.xpose.msra.mxu0 0.0
    %93 = vmatprep.subr.mxu0 0.0
    %94 = vmatpush2.xpose.msra.mxu0 0.0
    %95 = vmatprep.subr.mxu0 0.0
    %96 = vmatpush2.xpose.msra.mxu0 0.0
    %97 = vmatprep.subr.mxu0 0.0
    %98 = vmatpush2.xpose.msra.mxu0 0.0
    %99 = vmatprep.subr.mxu0 0.0
    %100 = vmatpush2.xpose.msra.mxu0 0.0
    %101 = vmatprep.subr.mxu0 0.0
    %102 = vmatpush2.xpose.msra.mxu0 0.0
    %103 = vmatprep.subr.mxu0 0.0
    %104 = vmatpush2.xpose.msra.mxu0 0.0
    %105 = vmatprep.subr.mxu0 0.0
    %106 = vmatpush2.xpose.msra.mxu0 0.0
    %107 = vmatprep.subr.mxu0 0.0
    %108 = vmatpush2.xpose.msra.mxu0 0.0
    %109 = vmatprep.subr.mxu0 0.0
    %110 = vmatpush2.xpose.msra.mxu0 0.0
    %111 = vmatprep.subr.mxu0 0.0
    %112 = vmatpush2.xpose.msra.mxu0 0.0
    %113 = vmatprep.mubr.f32.mxu0 0.0
    %114 = vmatmul.mubr.f32.gmra.mxu0 %v44
    %v115 = vpop.f32.mrf.mxu0
    %v116 = vadd.f32 0.0, %v115
    %v117 = vpop.f32.mrf.mxu0
    %118 = vdwg.mxu0
    %v119 = vmul.f32 %v40, %v40
    %v120 = vsel %vm42, %v119, 0.0
    %121 = vadd.xlane.f32.xlu0 %v120
    %v122 = vpop.xlane.xlu0 %121
    %v123 = vrsqrt.pop %v122
    %v124 = vmul.f32 %v122, %v123
    %vm125 = vcmp.eq.f32.partialorder %v122, inf
    %v126 = vsel %vm125, %v122, %v124
    %vm127 = vcmp.eq.f32.partialorder %v122, 0.0
    %v128 = vand.u32 %v122, 2147483648
    %v129 = vsel %vm127, %v128, %v126
    %v130 = vmul.f32 %v41, %v41
    %v132 = vsel %vm42, 1.0, 0
    %v135 = vsel %vm42, %v130, 0
    %137 = vmatprep.subr.mxu0 0.0
    %138 = vmatpush1.xpose.msra.mxu0 0.0
    %139 = vmatprep.subr.mxu0 0.0
    %140 = vmatpush1.xpose.msra.mxu0 0.0
    %141 = vmatprep.subr.mxu0 0.0
    %142 = vmatpush1.xpose.msra.mxu0 0.0
    %143 = vmatprep.subr.mxu0 0.0
    %144 = vmatpush1.xpose.msra.mxu0 0.0
    %145 = vmatprep.subr.mxu0 0.0
    %146 = vmatpush1.xpose.msra.mxu0 0.0
    %147 = vmatprep.subr.mxu0 0.0
    %148 = vmatpush1.xpose.msra.mxu0 0.0
    %149 = vmatprep.subr.mxu0 0.0
    %150 = vmatpush1.xpose.msra.mxu0 0.0
    %151 = vmatprep.subr.mxu0 0.0
    %152 = vmatpush1.xpose.msra.mxu0 0.0
    %153 = vmatprep.subr.mxu0 0.0
    %154 = vmatpush1.xpose.msra.mxu0 0.0
    %155 = vmatprep.subr.mxu0 0.0
    %156 = vmatpush1.xpose.msra.mxu0 0.0
    %157 = vmatprep.subr.mxu0 0.0
    %158 = vmatpush1.xpose.msra.mxu0 0.0
    %159 = vmatprep.subr.mxu0 0.0
    %160 = vmatpush1.xpose.msra.mxu0 0.0
    %161 = vmatprep.subr.mxu0 0.0
    %162 = vmatpush1.xpose.msra.mxu0 0.0
    %163 = vmatprep.subr.mxu0 0.0
    %164 = vmatpush1.xpose.msra.mxu0 0.0
    %165 = vmatprep.subr.mxu0 0.0
    %166 = vmatpush1.xpose.msra.mxu0 0.0
    %167 = vmatprep.subr.mxu0 0.0
    %168 = vmatpush1.xpose.msra.mxu0 %v135
    %169 = vmatprep.subr.mxu0 0.0
    %170 = vmatpush2.xpose.msra.mxu0 0.0
    %171 = vmatprep.subr.mxu0 0.0
    %172 = vmatpush2.xpose.msra.mxu0 0.0
    %173 = vmatprep.subr.mxu0 0.0
    %174 = vmatpush2.xpose.msra.mxu0 0.0
    %175 = vmatprep.subr.mxu0 0.0
    %176 = vmatpush2.xpose.msra.mxu0 0.0
    %177 = vmatprep.subr.mxu0 0.0
    %178 = vmatpush2.xpose.msra.mxu0 0.0
    %179 = vmatprep.subr.mxu0 0.0
    %180 = vmatpush2.xpose.msra.mxu0 0.0
    %181 = vmatprep.subr.mxu0 0.0
    %182 = vmatpush2.xpose.msra.mxu0 0.0
    %183 = vmatprep.subr.mxu0 0.0
    %184 = vmatpush2.xpose.msra.mxu0 0.0
    %185 = vmatprep.subr.mxu0 0.0
    %186 = vmatpush2.xpose.msra.mxu0 0.0
    %187 = vmatprep.subr.mxu0 0.0
    %188 = vmatpush2.xpose.msra.mxu0 0.0
    %189 = vmatprep.subr.mxu0 0.0
    %190 = vmatpush2.xpose.msra.mxu0 0.0
    %191 = vmatprep.subr.mxu0 0.0
    %192 = vmatpush2.xpose.msra.mxu0 0.0
    %193 = vmatprep.subr.mxu0 0.0
    %194 = vmatpush2.xpose.msra.mxu0 0.0
    %195 = vmatprep.subr.mxu0 0.0
    %196 = vmatpush2.xpose.msra.mxu0 0.0
    %197 = vmatprep.subr.mxu0 0.0
    %198 = vmatpush2.xpose.msra.mxu0 0.0
    %199 = vmatprep.subr.mxu0 0.0
    %200 = vmatpush2.xpose.msra.mxu0 0.0
    %201 = vmatprep.mubr.f32.mxu0 0.0
    %202 = vmatmul.mubr.f32.gmra.mxu0 %v132
    %v203 = vpop.f32.mrf.mxu0
    %v204 = vadd.f32 0.0, %v203
    %v205 = vpop.f32.mrf.mxu0
    %206 = vdwg.mxu0
    %v207 = vrsqrt.pop %v204
    %v208 = vmul.f32 %v204, %v207
    %vm209 = vcmp.eq.f32.partialorder %v204, inf
    %v210 = vsel %vm209, %v204, %v208
    %vm211 = vcmp.eq.f32.partialorder %v204, 0.0
    %v212 = vand.u32 %v204, 2147483648
    %v213 = vsel %vm211, %v212, %v210
    %s214 = sld [smem:[#allocation2]]
    %v215 = vstv %s214
    %v216 = vmul.f32 %v213, %v215
    %v217 = vlaneseq
    %v218 = vshrl.u32 %v217, 7
    %v219 = vsub.s32 0, %v218
    %v220 = vrot.slane %v216, %v219
    %v221 = vmul.f32 %v129, %v220
    %s222 = smul.f32 %s214, 1e-08
    %v223 = vstv %s222
    %v224 = vmax.f32 %v221, %v223
    %v225 = vrcp.pop %v224
    %v226 = vmul.f32 %v116, %v225
    %vm227 = vcmask 64512
    %228 = vst.msk [vmem:[#allocation8] sm:$0xff] %vm227, %v226
    // Predicated region
    $region22: #{tpu_custom_call.1} parent=1 // pred_check
      _
    $region23: #{tpu_custom_call.1} parent=1 // pred_check_branch
      %230 = sbr.rel (0) target = $region25
    $region24: #{tpu_custom_call.1} parent=1 // pred_region
      %s232 = ssub.s32 128, 128
      %233 = vsyncadd [#allocation5], %s232
      %s235 = sshll.u32 [#allocation8], 4
      %s236 = int_to_ptr.vmem [resolvable:$true] %s235
      %238 = dma.vmem_to_hbm [thread:$0]  %s236, 128, %s3, [#allocation5]
    $region25: #{tpu_custom_call.1} parent=1 // pred_fallthru
      _
    // Predicated region
    $region26: #{tpu_custom_call.1} parent=1 // pred_check
      _
    $region27: #{tpu_custom_call.1} parent=1 // pred_check_branch
      %240 = sbr.rel (0) target = $region29
    $region28: #{tpu_custom_call.1} parent=1 // pred_region
      %241 = dma.done [#allocation5], 128
    $region29: #{tpu_custom_call.1} parent=1 // pred_fallthru
      _
    %242 = vsyncpa [#allocation4], 1
    %243 = vsyncpa [#allocation7], 1
    %244 = vsyncpa [#allocation5], 1

</llo_original>
